<compile_context>
chip_gen: v7x
topology: tpu7x:2x2x1
jax: 0.10.0
libtpu: 0.0.40
codegen_flags: <defaults>
</compile_context>

<pallas_src>
import functools
import math

import jax
import jax.numpy as jnp
from jax.experimental import pallas as pl
from jax.experimental.pallas import tpu as pltpu


_VMEM_LIMIT = 64 * 1024 * 1024


def _round_up(x, m):
    return ((x + m - 1) // m) * m


# ---------------------------------------------------------------------------
# Pallas kernels
# ---------------------------------------------------------------------------

def _sqdist_kernel(s_ref, dT_ref, out_ref):
    """dist[n, m] = -2*<s_n, d_m> + |s_n|^2 + |d_m|^2 on a (TN, TM) output tile."""
    s = s_ref[0]                                   # (TN, 3)
    dT = dT_ref[0]                                 # (3, TM)
    cross = jnp.dot(s, dT, preferred_element_type=jnp.float32)     # (TN, TM)  MXU
    s2 = jnp.sum(s * s, axis=1, keepdims=True)                     # (TN, 1)
    d2 = jnp.sum(dT * dT, axis=0, keepdims=True)                   # (1, TM)
    out_ref[0] = -2.0 * cross + s2 + d2


def pairwise_sqdist(src, dst):
    """src: (B, N, 3), dst: (B, M, 3) -> (B, N, M) squared distances (tiled over N, M)."""
    B, N, _ = src.shape
    _, M, _ = dst.shape
    TN = 256 if N > 256 else _round_up(N, 8)
    TM = 512 if M > 512 else _round_up(M, 128)
    Npad = _round_up(N, TN)
    Mpad = _round_up(M, TM)
    srcp = jnp.pad(src.astype(jnp.float32), ((0, 0), (0, Npad - N), (0, 0)))
    dstT = jnp.pad(dst.astype(jnp.float32), ((0, 0), (0, Mpad - M), (0, 0)))
    dstT = dstT.transpose(0, 2, 1)                 # (B, 3, Mpad): points live in lanes
    out = pl.pallas_call(
        _sqdist_kernel,
        out_shape=jax.ShapeDtypeStruct((B, Npad, Mpad), jnp.float32),
        grid=(B, Npad // TN, Mpad // TM),
        in_specs=[pl.BlockSpec((1, TN, 3), lambda b, i, j: (b, i, 0)),
                  pl.BlockSpec((1, 3, TM), lambda b, i, j: (b, 0, j))],
        out_specs=pl.BlockSpec((1, TN, TM), lambda b, i, j: (b, i, j)),
        compiler_params=pltpu.CompilerParams(
            dimension_semantics=("parallel", "parallel", "parallel"),
            vmem_limit_bytes=_VMEM_LIMIT),
    )(srcp, dstT)
    return out[:, :N, :M]


def _chain_kernel(*refs, num_layers, k_pad, k_real, compute_dtype):
    """Fused chain of (matmul + folded-BN shift + ReLU) layers on a (TP, C) row tile.

    If k_pad is not None the tile is a whole number of neighbor-groups of k_pad rows and
    the kernel additionally applies a softmax over the group axis of the final logits and
    a weighted sum against `values`, writing one row per group.
    """
    grouped = k_pad is not None
    x_ref = refs[0]
    off = 2 if grouped else 1
    v_ref = refs[1] if grouped else None
    layer_refs = refs[off:off + 2 * num_layers]
    o_ref = refs[-1]

    h = x_ref[...]                                                 # (TP, Cin_pad) bf16
    y = None
    for l in range(num_layers):
        w = layer_refs[2 * l][...]                                 # (Cin_pad, Cout_pad)
        s = layer_refs[2 * l + 1][...]                             # (1, Cout_pad) f32
        y = jnp.dot(h, w, preferred_element_type=jnp.float32)      # MXU
        y = jnp.maximum(y + s, 0.0)                                # folded BN + ReLU (f32)
        if l + 1 < num_layers:
            h = y.astype(compute_dtype)

    if not grouped:
        o_ref[...] = y
        return

    tp, c = y.shape
    g = tp // k_pad
    logits = y.reshape(g, k_pad, c)                                # tile-preserving split
    vals = v_ref[...].astype(jnp.float32).reshape(g, k_pad, c)
    m = jnp.max(logits, axis=1, keepdims=True)
    e = jnp.exp(logits - m)
    if k_real != k_pad:                                            # mask padded neighbors
        kidx = jax.lax.broadcasted_iota(jnp.int32, (g, k_pad, c), 1)
        e = jnp.where(kidx < k_real, e, 0.0)
    denom = jnp.sum(e, axis=1)                                     # (g, c)
    num = jnp.sum(e * vals, axis=1)                                # (g, c)
    o_ref[...] = num * pl.reciprocal(denom, approx=True)


def fused_pointwise_chain(x, layers, *, group_softmax_values=None,
                          compute_dtype=jnp.bfloat16, row_tile=1024):
    """Apply a chain of folded 1x1-Conv+BN+ReLU layers over the trailing channel dim of x,
    keeping intermediate activations on-chip.  If `group_softmax_values` is given, x has
    shape (..., K, Cin) and the kernel finishes with softmax(logits, axis=K)·values summed
    over K, returning (..., C)."""
    grouped = group_softmax_values is not None
    orig_shape = x.shape
    cin = orig_shape[-1]
    assert layers[0]["cin"] == cin, (layers[0]["cin"], cin)
    cin_pad = layers[0]["w_pad"].shape[0]
    cout = layers[-1]["cout"]
    cout_pad = layers[-1]["w_pad"].shape[1]

    if grouped:
        values = group_softmax_values
        k_real = orig_shape[-2]
        assert values.shape[:-1] == orig_shape[:-1]
        cv = values.shape[-1]
        cv_pad = _round_up(cv, 128)
        assert cv == cout and cv_pad == cout_pad, "softmax weights * values are elementwise"
        k_pad = _round_up(k_real, 8)
        if k_pad != k_real:
            pad_cfg = [(0, 0)] * (x.ndim - 2) + [(0, k_pad - k_real), (0, 0)]
            x = jnp.pad(x, pad_cfg)
            values = jnp.pad(values, pad_cfg)
        lead = orig_shape[:-2]
        num_groups = math.prod(lead)
        P = num_groups * k_pad
        tile_align = 8 * k_pad          # TP % k_pad == 0 and (TP // k_pad) % 8 == 0
    else:
        k_real = k_pad = None
        lead = orig_shape[:-1]
        P = math.prod(lead)
        tile_align = 8

    TP = row_tile if P > row_tile else P
    TP = _round_up(TP, tile_align)
    P_pad = _round_up(P, TP)

    xf = jnp.pad(x.reshape(P, cin), ((0, P_pad - P), (0, cin_pad - cin)))
    inputs = [xf.astype(compute_dtype)]
    in_specs = [pl.BlockSpec((TP, cin_pad), lambda i: (i, 0))]

    if grouped:
        vf = jnp.pad(values.reshape(P, cv), ((0, P_pad - P), (0, cv_pad - cv)))
        inputs.append(vf.astype(compute_dtype))
        in_specs.append(pl.BlockSpec((TP, cv_pad), lambda i: (i, 0)))

    for layer in layers:
        w = layer["w_pad"].astype(compute_dtype)
        s = layer["shift_pad"]                                     # keep f32 epilogue
        inputs += [w, s]
        in_specs += [pl.BlockSpec(w.shape, lambda i: (0, 0)),
                     pl.BlockSpec(s.shape, lambda i: (0, 0))]

    if grouped:
        out_rows, out_block, out_cols = P_pad // k_pad, TP // k_pad, cv_pad
    else:
        out_rows, out_block, out_cols = P_pad, TP, cout_pad

    out = pl.pallas_call(
        functools.partial(_chain_kernel, num_layers=len(layers),
                          k_pad=k_pad, k_real=k_real, compute_dtype=compute_dtype),
        out_shape=jax.ShapeDtypeStruct((out_rows, out_cols), jnp.float32),
        grid=(P_pad // TP,),
        in_specs=in_specs,
        out_specs=pl.BlockSpec((out_block, out_cols), lambda i: (i, 0)),
        compiler_params=pltpu.CompilerParams(
            dimension_semantics=("parallel",),
            vmem_limit_bytes=_VMEM_LIMIT),
    )(*inputs)

    if grouped:
        return out[:num_groups, :cv].reshape(*lead, cv)
    return out[:P, :cout].reshape(*lead, cout)


def conv2d_1x1(x, p, **kw):
    """Exact Conv2d([1,1], bn, relu) forward from the PyTorch module (permute->conv->permute
    back == per-position linear layer over the trailing channel dim)."""
    return fused_pointwise_chain(x, [p], **kw)


# ---------------------------------------------------------------------------
# Glue (KNN selection, gathers)
# ---------------------------------------------------------------------------

def knn(K, xyz, new_xyz):
    """knn_point: indices (B, S, K) of K nearest points of `xyz` for each `new_xyz`."""
    d = pairwise_sqdist(new_xyz, xyz)                # (B, S, M), tiled Pallas kernel
    # TODO(synk): fuse the top-K selection into the distance kernel (running K-best over M
    # tiles) so the full (B,S,M) matrix is never materialized; torch.topk(sorted=False)
    # tie-break order is unspecified anyway, we use ascending order.
    _, idx = jax.lax.top_k(-d, K)
    return idx


def gather_group(points, idx):
    """index_points_group: points (B, M, C), idx (B, N, K) -> (B, N, K, C).
    Per-batch gather — no (B, N, M, C) broadcast intermediate.  Indices come from top_k so
    they are always in-bounds; "clip" is semantically a no-op and avoids the fill path."""
    take = lambda p, i: jnp.take(p, i, axis=0, mode="clip")
    return jax.vmap(take)(points, idx)


def _norm_last(x):
    mu = jnp.mean(x, axis=-1, keepdims=True)
    sd = jnp.std(x, axis=-1, keepdims=True, ddof=1)          # torch.std is unbiased
    sd = jnp.where(sd == 0.0, 1.0, sd)                       # guard degenerate channels only
    return (x - mu) / sd


# ---------------------------------------------------------------------------
# Parameters (deterministic, synthetic) — BatchNorm folded into the conv
# ---------------------------------------------------------------------------

def make_conv_params(key, cin, cout):
    kw, kb = jax.random.split(key)
    w = jax.random.normal(kw, (cin, cout), jnp.float32) / jnp.sqrt(float(cin))
    b = jax.random.normal(kb, (cout,), jnp.float32) * 0.01
    # TODO(synk): BatchNorm uses eval-mode running stats (mean=0, var=1, gamma=1, beta=0);
    # training-mode batch statistics are not implemented.
    eps = 1e-5
    scale = jnp.ones((cout,), jnp.float32) / jnp.sqrt(1.0 + eps)
    shift = jnp.zeros((cout,), jnp.float32)
    # Fold BN into the conv: y = (x@w + b)*scale + shift  ==  x@(w*scale) + (b*scale+shift)
    w_f = w * scale[None, :]
    s_f = b * scale + shift
    cin_pad, cout_pad = _round_up(cin, 128), _round_up(cout, 128)
    w_pad = jnp.zeros((cin_pad, cout_pad), jnp.float32).at[:cin, :cout].set(w_f)
    s_pad = jnp.zeros((1, cout_pad), jnp.float32).at[:, :cout].set(s_f)
    return dict(w_pad=w_pad, shift_pad=s_pad, cin=cin, cout=cout)


def init_params(key, in_channels, mlp1, mlp2):
    assert mlp1[-1] == mlp2[-1], "broadcast WQ*feat in the reference requires equal last channels"
    keys = iter(jax.random.split(key, 64))
    params = {}
    params["pi_reverse_encoding"] = make_conv_params(next(keys), in_channels, in_channels)
    chans = 3 * in_channels + 10
    params["mlp1_convs"] = []
    for co in mlp1:
        params["mlp1_convs"].append(make_conv_params(next(keys), chans, co)); chans = co
    params["pi_encoding"] = make_conv_params(next(keys), 10, mlp1[-1])
    chans = 2 * mlp1[-1]
    params["mlp2_convs"] = []
    for co in mlp2:
        params["mlp2_convs"].append(make_conv_params(next(keys), chans, co)); chans = co
    params["pc_encoding"] = make_conv_params(next(keys), 10, mlp1[-1])
    chans = 2 * mlp1[-1] + in_channels
    params["mlp2_convs_new"] = []
    for co in mlp2:
        params["mlp2_convs_new"].append(make_conv_params(next(keys), chans, co)); chans = co
    return params


# ---------------------------------------------------------------------------
# All2AllCostVolume forward (built out of the fused Conv2d chains)
# ---------------------------------------------------------------------------

def all2all_cost_volume(params, warped_xyz, warped_points, f2_xyz, f2_points,
                        *, nsample, nsample_q, compute_dtype=jnp.bfloat16):
    B, N, _ = warped_xyz.shape
    C = warped_points.shape[-1]
    Kq, Kp = nsample_q, nsample

    # ---- first grouping: neighbors of warped_xyz inside the f2 cloud ----
    idx_q = knn(Kq, f2_xyz, warped_xyz)                          # (B, N, Kq)
    qi_xyz_grouped = gather_group(f2_xyz, idx_q)                 # (B, N, Kq, 3)
    qi_points_grouped = gather_group(f2_points, idx_q)           # (B, N, Kq, C)

    pi_xyz_expanded = jnp.broadcast_to(warped_xyz[:, :, None, :], (B, N, Kq, 3))
    pi_points_expanded = jnp.broadcast_to(warped_points[:, :, None, :], (B, N, Kq, C))
    pi_xyz_diff = qi_xyz_grouped - pi_xyz_expanded
    pi_euc_diff = jnp.sqrt(jnp.sum(pi_xyz_diff * pi_xyz_diff, axis=-1, keepdims=True) + 1e-20)
    pi_xyz_diff_concat = jnp.concatenate(
        [pi_xyz_expanded, qi_xyz_grouped, pi_xyz_diff, pi_euc_diff], axis=3)     # (B,N,Kq,10)

    pi_points_expanded = _norm_last(pi_points_expanded)
    qi_points_grouped = _norm_last(qi_points_grouped)
    pi_feat_diff = jnp.concatenate([pi_points_expanded, qi_points_grouped], axis=-1)
    pi_feat_diff_0 = pi_points_expanded * qi_points_grouped
    # Apply the pointwise conv BEFORE broadcasting over N (identical result, N× less work).
    pi_feat_max = jnp.max(pi_feat_diff_0, axis=1, keepdims=True)                 # (B,1,Kq,C)
    pi_feat_max = conv2d_1x1(pi_feat_max, params["pi_reverse_encoding"],
                             compute_dtype=compute_dtype)
    pi_feat_diff_1 = jnp.broadcast_to(pi_feat_max, (B, N, Kq, C))
    pi_feat_diff_2 = jnp.concatenate([pi_feat_diff, pi_feat_diff_1], axis=-1)
    pi_feat1_new = jnp.concatenate([pi_xyz_diff_concat, pi_feat_diff_2], axis=3)  # (B,N,Kq,3C+10)

    # mlp1 chain fused in one pallas_call (activations never touch HBM between layers)
    pi_feat1_new = fused_pointwise_chain(pi_feat1_new, params["mlp1_convs"],
                                         compute_dtype=compute_dtype)
    pi_xyz_encoding = conv2d_1x1(pi_xyz_diff_concat, params["pi_encoding"],
                                 compute_dtype=compute_dtype)
    pi_concat = jnp.concatenate([pi_xyz_encoding, pi_feat1_new], axis=3)
    # mlp2 chain + softmax(WQ over Kq) * feat summed over Kq, fused in one pallas_call
    pi_feat1_new = fused_pointwise_chain(pi_concat, params["mlp2_convs"],
                                         group_softmax_values=pi_feat1_new,
                                         compute_dtype=compute_dtype)            # (B,N,mlp1[-1])

    # ---- second grouping: self-neighbors inside the warped cloud ----
    idx_p = knn(Kp, warped_xyz, warped_xyz)                                      # (B, N, Kp)
    pc_xyz_grouped = gather_group(warped_xyz, idx_p)                             # (B, N, Kp, 3)
    pc_points_grouped = gather_group(pi_feat1_new, idx_p)                        # (B, N, Kp, mlp1[-1])

    pc_xyz_new = jnp.broadcast_to(warped_xyz[:, :, None, :], (B, N, Kp, 3))
    pc_points_new = jnp.broadcast_to(warped_points[:, :, None, :], (B, N, Kp, C))
    pc_xyz_diff = pc_xyz_grouped - pc_xyz_new
    pc_euc_diff = jnp.sqrt(jnp.sum(pc_xyz_diff * pc_xyz_diff, axis=3, keepdims=True) + 1e-20)
    pc_xyz_diff_concat = jnp.concatenate(
        [pc_xyz_new, pc_xyz_grouped, pc_xyz_diff, pc_euc_diff], axis=3)          # (B,N,Kp,10)

    pc_xyz_encoding = conv2d_1x1(pc_xyz_diff_concat, params["pc_encoding"],
                                 compute_dtype=compute_dtype)
    pc_concat = jnp.concatenate([pc_xyz_encoding, pc_points_new, pc_points_grouped], axis=-1)
    # mlp2_new chain + softmax(WP over Kp) * grouped feat summed over Kp, fused
    pc_feat1_new = fused_pointwise_chain(pc_concat, params["mlp2_convs_new"],
                                         group_softmax_values=pc_points_grouped,
                                         compute_dtype=compute_dtype)            # (B,N,mlp2[-1])
    return pc_feat1_new


# ---------------------------------------------------------------------------
# Driver
# ---------------------------------------------------------------------------

if __name__ == "__main__":
    B, N, M, C = 2, 16, 16, 4
    nsample, nsample_q = 4, 8
    mlp1 = [16, 8]
    mlp2 = [16, 8]

    key = jax.random.PRNGKey(0)
    k1, k2, k3, k4, kp = jax.random.split(key, 5)
    warped_xyz = jax.random.normal(k1, (B, N, 3), jnp.float32)
    warped_points = jax.random.normal(k2, (B, N, C), jnp.float32)
    f2_xyz = jax.random.normal(k3, (B, M, 3), jnp.float32)
    f2_points = jax.random.normal(k4, (B, M, C), jnp.float32)

    params = init_params(kp, C, mlp1, mlp2)

    fwd = functools.partial(all2all_cost_volume, nsample=nsample, nsample_q=nsample_q)
    out = fwd(params, warped_xyz, warped_points, f2_xyz, f2_points)
    out = jax.block_until_ready(out)

    assert out.shape == (B, N, mlp2[-1]), out.shape
    assert bool(jnp.all(jnp.isfinite(out)))
    print("KERNEL_OK")
</pallas_src>

<mosaic_0001>
module attributes {stable_mosaic.version = 11 : i64} {
  func.func @_sqdist_kernel(%arg0: i32, %arg1: i32, %arg2: i32, %arg3: memref<1x16x3xf32, #tpu.memory_space<vmem>>, %arg4: memref<1x3x128xf32, #tpu.memory_space<vmem>>, %arg5: memref<1x16x128xf32, #tpu.memory_space<vmem>>) attributes {dimension_semantics = [#tpu.dimension_semantics<parallel>, #tpu.dimension_semantics<parallel>, #tpu.dimension_semantics<parallel>], iteration_bounds = array<i64: 2, 1, 1>, scalar_prefetch = 0 : i64, scratch_operands = 0 : i64, tpu.core_type = #tpu.core_type<tc>, window_params = [{transform_indices = @transform_0, window_bounds = array<i64: 1, 16, 3>}, {transform_indices = @transform_1, window_bounds = array<i64: 1, 3, 128>}, {transform_indices = @transform_2, window_bounds = array<i64: 1, 16, 128>}]} {
    %c0 = arith.constant 0 : index
    %c0_0 = arith.constant 0 : index
    %c0_1 = arith.constant 0 : index
    %0 = vector.load %arg3[%c0, %c0_0, %c0_1] : memref<1x16x3xf32, #tpu.memory_space<vmem>>, vector<1x16x3xf32>
    %1 = vector.shape_cast %0 : vector<1x16x3xf32> to vector<16x3xf32>
    %c0_2 = arith.constant 0 : index
    %c0_3 = arith.constant 0 : index
    %c0_4 = arith.constant 0 : index
    %2 = vector.load %arg4[%c0_2, %c0_3, %c0_4] : memref<1x3x128xf32, #tpu.memory_space<vmem>>, vector<1x3x128xf32>
    %3 = vector.shape_cast %2 : vector<1x3x128xf32> to vector<3x128xf32>
    %cst = arith.constant dense<0.000000e+00> : vector<16x128xf32>
    %4 = tpu.matmul %1, %3, %cst {dimension_numbers = #tpu.dot_dimension_numbers<[1], [0], [0], [1], [0, 0, 1, 1], [], []>} : vector<16x3xf32>, vector<3x128xf32>, vector<16x128xf32> -> vector<16x128xf32>
    %5 = arith.mulf %1, %1 : vector<16x3xf32>
    %cst_5 = arith.constant dense<0.000000e+00> : vector<16xf32>
    %6 = vector.multi_reduction <add>, %5, %cst_5 [1] : vector<16x3xf32> to vector<16xf32>
    %7 = vector.shape_cast %6 : vector<16xf32> to vector<16x1xf32>
    %8 = arith.mulf %3, %3 : vector<3x128xf32>
    %cst_6 = arith.constant dense<0.000000e+00> : vector<128xf32>
    %9 = vector.multi_reduction <add>, %8, %cst_6 [0] : vector<3x128xf32> to vector<128xf32>
    %10 = vector.shape_cast %9 : vector<128xf32> to vector<1x128xf32>
    %cst_7 = arith.constant -2.000000e+00 : f32
    %11 = vector.broadcast %cst_7 : f32 to vector<16x128xf32>
    %12 = arith.mulf %11, %4 : vector<16x128xf32>
    %13 = vector.broadcast %7 : vector<16x1xf32> to vector<16x128xf32>
    %14 = arith.addf %12, %13 : vector<16x128xf32>
    %15 = vector.broadcast %10 : vector<1x128xf32> to vector<16x128xf32>
    %16 = arith.addf %14, %15 : vector<16x128xf32>
    %c0_8 = arith.constant 0 : index
    %c0_9 = arith.constant 0 : index
    %c0_10 = arith.constant 0 : index
    %17 = vector.load %arg5[%c0_8, %c0_9, %c0_10] : memref<1x16x128xf32, #tpu.memory_space<vmem>>, vector<1x16x128xf32>
    %18 = vector.shape_cast %17 : vector<1x16x128xf32> to vector<16x128xf32>
    %19 = vector.shape_cast %16 : vector<16x128xf32> to vector<1x16x128xf32>
    tpu.vector_store %arg5[%c0_8, %c0_9, %c0_10], %19 {strides = array<i32>} : memref<1x16x128xf32, #tpu.memory_space<vmem>>, vector<1x16x128xf32>,
    return
  }
  func.func @transform_0(%arg0: i32, %arg1: i32, %arg2: i32) -> (i32, i32, i32) {
    %c0_i32 = arith.constant 0 : i32
    %c0_i32_0 = arith.constant 0 : i32
    return %arg0, %arg1, %c0_i32 : i32, i32, i32
  }
  func.func @transform_1(%arg0: i32, %arg1: i32, %arg2: i32) -> (i32, i32, i32) {
    %c0_i32 = arith.constant 0 : i32
    %c0_i32_0 = arith.constant 0 : i32
    return %arg0, %c0_i32, %arg2 : i32, i32, i32
  }
  func.func @transform_2(%arg0: i32, %arg1: i32, %arg2: i32) -> (i32, i32, i32) {
    %c0_i32 = arith.constant 0 : i32
    return %arg0, %arg1, %arg2 : i32, i32, i32
  }
}

</mosaic_0001>

<llo_original>
// kernel: tpu_custom_call.1
$region0: #{tpu_custom_call.1}
  #allocation0 [shape = 'u32[]', space=smem, size = 0x4, offset = 0x4, fixed_abs, tag = 'smem constant byte address 0x4 - core index']
  #allocation1 [shape = 'u32[144,128]{1,0:T(1,128)}', space=vmem, size = 0x12000, scoped, tag = 'internal scratch']
  %s0 = inlined_call_operand.hbm [shape: f32[2,16,3], index: 0, kind: input, shape index: {}]
  %s1 = inlined_call_operand.hbm [shape: f32[2,3,128], index: 1, kind: input, shape index: {}]
  %s2 = inlined_call_operand.hbm [shape: f32[2,16,128], index: 2, kind: output, shape index: {}]
  %s3 = sld [smem:[#allocation0]]
  $region49: #{tpu_custom_call.1} parent=0
    _
  %s5 = ssub.s32 1, %s3
  %s6 = scalar_select 0, %s5, %s3
  $region1: #{tpu_custom_call.1} parent=0
    #allocation2 [shape = 'u8[16384]{0}', space=vmem, size = 0x4000, scoped, tag = 'input window, operand 0']
    #allocation3 [shape = 's32[2]{0}', space=sflag, size = 0x8, scoped, tag = 'scoped memory for tpu_custom_call.1']
    #allocation4 [shape = 's32[2]{0}', space=sflag, size = 0x8, scoped, tag = 'scoped memory for tpu_custom_call.1']
    #allocation5 [shape = 'u8[4096]{0}', space=vmem, size = 0x1000, scoped, tag = 'input window, operand 1']
    #allocation6 [shape = 's32[2]{0}', space=sflag, size = 0x8, scoped, tag = 'scoped memory for tpu_custom_call.1']
    #allocation7 [shape = 'u8[16384]{0}', space=vmem, size = 0x4000, scoped, tag = 'output window, operand 0']
    %7 = vsyncpa [#allocation3], 0
    %s8 = scalar_lea.sflag [#allocation3], 1
    %9 = vsyncpa %s8, 0
    %10 = vsyncpa [#allocation6], 0
    %s11 = scalar_lea.sflag [#allocation6], 1
    %12 = vsyncpa %s11, 0
    %13 = vsyncpa [#allocation4], 0
    %s14 = scalar_lea.sflag [#allocation4], 1
    %15 = vsyncpa %s14, 0
    loop: start=0, step=1, limit=4
    $region2: #{tpu_custom_call.1} parent=1 // loop_pre_header
      _
    $region3: #{tpu_custom_call.1} parent=1 // loop_header
      %s17 = sphi 0, %s21
      %p18 = scmp.ge.s32.totalorder %s17, 4
      %s24 = sphi 0, %s43
      %s25 = sphi 0, %s39
      %s26 = sphi 0, %s35
      %s27 = sphi 0, %s24
      %s28 = sphi 0, %s25
      %s29 = sphi 0, %s26
      %s30 = sphi 0, %s27
      %s31 = sphi 0, %s28
      %s32 = sphi 0, %s29
      %s48 = sphi 0, %s50
      %s51 = sphi 0, %s48
      %s52 = sphi 0, %s51
      %s68 = sphi 0, %s52
      %s76 = sphi 0, %s78
      %s79 = sphi 0, %s76
      %s80 = sphi 0, %s79
      %s96 = sphi 0, %s80
      %s106 = sphi 0, %s108
      %s109 = sphi 0, %s106
      %s110 = sphi 0, %s109
      %s126 = sphi 0, %s110
    $region4: #{tpu_custom_call.1} parent=1 // loop_header_branch
      %20 = sbr.rel (%p18) target = $region8
    $region5: #{tpu_custom_call.1} parent=1 // loop_body
      %s22 = ssub.s32 %s17, 1
      %s23 = ssub.s32 %s17, 2
      %s33 = sadd.s32 1, %s26
      %p34 = scmp.ge.s32.totalorder %s33, 1
      %s35 = scalar_select %p34, 0, %s33
      %s36 = sadd.s32 1, %s25
      %s37 = scalar_select %p34, %s36, %s25
      %p38 = scmp.ge.s32.totalorder %s37, 1
      %s39 = scalar_select %p38, 0, %s37
      %s40 = sadd.s32 1, %s24
      %s41 = scalar_select %p38, %s40, %s24
      %p42 = scmp.ge.s32.totalorder %s41, 2
      %s43 = scalar_select %p42, 0, %s41
      %s44 = ssub.s32 %s24, %s43
      %s45 = ssub.s32 %s25, %s39
      %s46 = sor.u32 %s44, %s45
      %p47 = scmp.eq.s32.totalorder %s46, 0
      %s49 = sadd.s32 %s48, 1
      %s50 = scalar_select %p47, %s48, %s49
      %p53 = pneg %p47
      %p54 = scmp.eq.s32.totalorder %s17, 1
      %p55 = por %p53, %p54
      %p56 = scmp.ne.s32.totalorder %s48, %s51
      %p57 = scmp.eq.s32.totalorder %s17, 0
      %p58 = por %p56, %p57
      %p59 = scmp.ne.s32.totalorder %s48, %s51
      %p60 = scmp.eq.s32.totalorder %s22, 1
      %p61 = por %p59, %p60
      %p62 = scmp.ne.s32.totalorder %s51, %s52
      %p63 = scmp.eq.s32.totalorder %s22, 0
      %p64 = por %p62, %p63
      %p65 = scmp.ne.s32.totalorder %s51, %s52
      %p66 = scmp.eq.s32.totalorder %s23, 1
      %p67 = por %p65, %p66
      %p69 = scmp.ne.s32.totalorder %s52, %s68
      %p70 = scmp.eq.s32.totalorder %s23, 0
      %p71 = por %p69, %p70
      %s72 = ssub.s32 %s24, %s43
      %s73 = ssub.s32 %s26, %s35
      %s74 = sor.u32 %s72, %s73
      %p75 = scmp.eq.s32.totalorder %s74, 0
      %s77 = sadd.s32 %s76, 1
      %s78 = scalar_select %p75, %s76, %s77
      %p81 = pneg %p75
      %p82 = scmp.eq.s32.totalorder %s17, 1
      %p83 = por %p81, %p82
      %p84 = scmp.ne.s32.totalorder %s76, %s79
      %p85 = scmp.eq.s32.totalorder %s17, 0
      %p86 = por %p84, %p85
      %p87 = scmp.ne.s32.totalorder %s76, %s79
      %p88 = scmp.eq.s32.totalorder %s22, 1
      %p89 = por %p87, %p88
      %p90 = scmp.ne.s32.totalorder %s79, %s80
      %p91 = scmp.eq.s32.totalorder %s22, 0
      %p92 = por %p90, %p91
      %p93 = scmp.ne.s32.totalorder %s79, %s80
      %p94 = scmp.eq.s32.totalorder %s23, 1
      %p95 = por %p93, %p94
      %p97 = scmp.ne.s32.totalorder %s80, %s96
      %p98 = scmp.eq.s32.totalorder %s23, 0
      %p99 = por %p97, %p98
      %s100 = ssub.s32 %s24, %s43
      %s101 = ssub.s32 %s25, %s39
      %s102 = sor.u32 %s100, %s101
      %s103 = ssub.s32 %s26, %s35
      %s104 = sor.u32 %s102, %s103
      %p105 = scmp.eq.s32.totalorder %s104, 0
      %s107 = sadd.s32 %s106, 1
      %s108 = scalar_select %p105, %s106, %s107
      %p111 = pneg %p105
      %p112 = scmp.eq.s32.totalorder %s17, 1
      %p113 = por %p111, %p112
      %p114 = scmp.ne.s32.totalorder %s106, %s109
      %p115 = scmp.eq.s32.totalorder %s17, 0
      %p116 = por %p114, %p115
      %p117 = scmp.ne.s32.totalorder %s106, %s109
      %p118 = scmp.eq.s32.totalorder %s22, 1
      %p119 = por %p117, %p118
      %p120 = scmp.ne.s32.totalorder %s109, %s110
      %p121 = scmp.eq.s32.totalorder %s22, 0
      %p122 = por %p120, %p121
      %p123 = scmp.ne.s32.totalorder %s109, %s110
      %p124 = scmp.eq.s32.totalorder %s23, 1
      %p125 = por %p123, %p124
      %p127 = scmp.ne.s32.totalorder %s110, %s126
      %p128 = scmp.eq.s32.totalorder %s23, 0
      %p129 = por %p127, %p128
      %p130 = scmp.le.s32.totalorder 1, %s17
      %p131 = scmp.lt.s32.totalorder %s17, 3
      %p132 = pnand %p130, %p131
      %p133 = pneg %p132
      // Predicated region
      $region9: #{tpu_custom_call.1} parent=5 // pred_check
        _
      $region10: #{tpu_custom_call.1} parent=5 // pred_check_branch
        %135 = sbr.rel (%p132) target = $region12
      $region11: #{tpu_custom_call.1} parent=5 // pred_region
        %s136 = ssub.s32 %s17, 1
      $region12: #{tpu_custom_call.1} parent=5 // pred_fallthru
        _
      %p137 = scmp.lt.s32.totalorder %s17, 2
      // Predicated region
      $region13: #{tpu_custom_call.1} parent=5 // pred_check
        %p138 = pneg %p137
      $region14: #{tpu_custom_call.1} parent=5 // pred_check_branch
        %140 = sbr.rel (%p138) target = $region16
      $region15: #{tpu_custom_call.1} parent=5 // pred_region
        // Predicated region
        $region17: #{tpu_custom_call.1} parent=15 // pred_check
          %p141 = pneg %p58
        $region18: #{tpu_custom_call.1} parent=15 // pred_check_branch
          %143 = sbr.rel (%p141) target = $region20
        $region19: #{tpu_custom_call.1} parent=15 // pred_region
          %s144 = sand.u32 %s48, 1
          %s145 = scalar_lea.sflag [#allocation3], %s144
          %s146 = sand.u32 %s48, 1
          %s147 = smul.addr %s146, 16
          %s148 = scalar_lea.vmem [#allocation2], %s147
          %s149 = smul.u32 2, %s25
          %s151 = ssub.s32 256, 256
          %152 = vsyncadd %s145, %s151
          %s153 = smul.addr %s24, 2
          %s154 = sadd.s32 %s149, %s153
          %s155 = smul.addr %s154, 128
          %s156 = scalar_lea.hbm %s0, %s155
          %s157 = sshll.u32 %s148, 4
          %s158 = int_to_ptr.vmem [resolvable:$true] %s157
          %163 = dma.hbm_to_vmem [thread:$0]  %s156, 256, %s158, %s145, 128, 128, 8
        $region20: #{tpu_custom_call.1} parent=15 // pred_fallthru
          _
        // Predicated region
        $region21: #{tpu_custom_call.1} parent=15 // pred_check
          %p164 = pneg %p86
        $region22: #{tpu_custom_call.1} parent=15 // pred_check_branch
          %166 = sbr.rel (%p164) target = $region24
        $region23: #{tpu_custom_call.1} parent=15 // pred_region
          %s167 = sand.u32 %s76, 1
          %s168 = scalar_lea.sflag [#allocation6], %s167
          %s169 = sand.u32 %s76, 1
          %s170 = smul.addr %s169, 4
          %s171 = scalar_lea.vmem [#allocation5], %s170
          %s173 = ssub.s32 64, 64
          %174 = vsyncadd %s168, %s173
          %s175 = sadd.s32 %s26, %s24
          %s176 = smul.addr %s175, 64
          %s177 = scalar_lea.hbm %s1, %s176
          %s179 = sshll.u32 %s171, 4
          %s180 = int_to_ptr.vmem [resolvable:$true] %s179
          %182 = dma.hbm_to_vmem [thread:$0]  %s177, 64, %s180, %s168
        $region24: #{tpu_custom_call.1} parent=15 // pred_fallthru
          _
      $region16: #{tpu_custom_call.1} parent=5 // pred_fallthru
        _
      %p183 = scmp.le.s32.totalorder 1, %s17
      %p184 = scmp.lt.s32.totalorder %s17, 3
      %p185 = pnand %p183, %p184
      %p186 = pneg %p185
      // Predicated region
      $region25: #{tpu_custom_call.1} parent=5 // pred_check
        _
      $region26: #{tpu_custom_call.1} parent=5 // pred_check_branch
        %188 = sbr.rel (%p185) target = $region28
      $region27: #{tpu_custom_call.1} parent=5 // pred_region
        %s189 = ssub.s32 %s17, 1
        %s190 = sand.u32 %s51, 1
        %s191 = scalar_lea.sflag [#allocation3], %s190
        %s192 = sand.u32 %s51, 1
        %s193 = smul.addr %s192, 16
        %s194 = scalar_lea.vmem [#allocation2], %s193
        // Predicated region
        $region29: #{tpu_custom_call.1} parent=27 // pred_check
          %p195 = pneg %p64
        $region30: #{tpu_custom_call.1} parent=27 // pred_check_branch
          %197 = sbr.rel (%p195) target = $region32
        $region31: #{tpu_custom_call.1} parent=27 // pred_region
          %198 = dma.done %s191, 256
        $region32: #{tpu_custom_call.1} parent=27 // pred_fallthru
          _
        %s199 = sand.u32 %s79, 1
        %s200 = scalar_lea.sflag [#allocation6], %s199
        %s201 = sand.u32 %s79, 1
        %s202 = smul.addr %s201, 4
        %s203 = scalar_lea.vmem [#allocation5], %s202
        // Predicated region
        $region33: #{tpu_custom_call.1} parent=27 // pred_check
          %p204 = pneg %p92
        $region34: #{tpu_custom_call.1} parent=27 // pred_check_branch
          %206 = sbr.rel (%p204) target = $region36
        $region35: #{tpu_custom_call.1} parent=27 // pred_region
          %207 = dma.done %s200, 64
        $region36: #{tpu_custom_call.1} parent=27 // pred_fallthru
          _
        %s208 = sand.u32 %s51, 1
        %s209 = scalar_lea.sflag [#allocation3], %s208
        %s210 = sand.u32 %s51, 1
        %s211 = smul.addr %s210, 16
        %s212 = scalar_lea.vmem [#allocation2], %s211
        %p213 = pneg %p64
        %p214 = pneg %p61
        %s215 = sand.u32 %s79, 1
        %s216 = scalar_lea.sflag [#allocation6], %s215
        %s217 = sand.u32 %s79, 1
        %s218 = smul.addr %s217, 4
        %s219 = scalar_lea.vmem [#allocation5], %s218
        %p220 = pneg %p92
        %p221 = pneg %p89
        %p222 = pneg %p122
        %p223 = pneg %p119
        %s224 = sand.u32 %s109, 1
        %s225 = scalar_lea.sflag [#allocation4], %s224
        %s226 = sand.u32 %s109, 1
        %s227 = smul.addr %s226, 16
        %s228 = scalar_lea.vmem [#allocation7], %s227
        %s229 = smul.u32 2, %s28
        %s230 = smul.u32 2, %s28
        %v231 = vld [vmem:[%s194] sm:$0xff]
        %v232 = vld [vmem:[%s194 + $0x8] sm:$0xff]
        %v233 = vld [vmem:[%s203] sm:$0x7]
        %vm234 = vcmask 23552
        %v236 = vsel %vm234, %v231, 0
        %v239 = vsel %vm234, %v232, 0
        %vm241 = vcmask 1042432
        %v243 = vsel %vm241, %v233, 0
        %245 = vmatprep.subr.mxu0 0.0
        %246 = vmatpush1.msra.mxu0 %v243
        %247 = vmatprep.subr.mxu0 0.0
        %248 = vmatpush1.msra.mxu0 0.0
        %249 = vmatprep.subr.mxu0 0.0
        %250 = vmatpush1.msra.mxu0 0.0
        %251 = vmatprep.subr.mxu0 0.0
        %252 = vmatpush1.msra.mxu0 0.0
        %253 = vmatprep.subr.mxu0 0.0
        %254 = vmatpush1.msra.mxu0 0.0
        %255 = vmatprep.subr.mxu0 0.0
        %256 = vmatpush1.msra.mxu0 0.0
        %257 = vmatprep.subr.mxu0 0.0
        %258 = vmatpush1.msra.mxu0 0.0
        %259 = vmatprep.subr.mxu0 0.0
        %260 = vmatpush1.msra.mxu0 0.0
        %261 = vmatprep.subr.mxu0 0.0
        %262 = vmatpush1.msra.mxu0 0.0
        %263 = vmatprep.subr.mxu0 0.0
        %264 = vmatpush1.msra.mxu0 0.0
        %265 = vmatprep.subr.mxu0 0.0
        %266 = vmatpush1.msra.mxu0 0.0
        %267 = vmatprep.subr.mxu0 0.0
        %268 = vmatpush1.msra.mxu0 0.0
        %269 = vmatprep.subr.mxu0 0.0
        %270 = vmatpush1.msra.mxu0 0.0
        %271 = vmatprep.subr.mxu0 0.0
        %272 = vmatpush1.msra.mxu0 0.0
        %273 = vmatprep.subr.mxu0 0.0
        %274 = vmatpush1.msra.mxu0 0.0
        %275 = vmatprep.subr.mxu0 0.0
        %276 = vmatpush1.msra.mxu0 0.0
        %277 = vmatprep.subr.mxu0 0.0
        %278 = vmatpush1.msra.mxu0 0.0
        %279 = vmatprep.subr.mxu0 0.0
        %280 = vmatpush1.msra.mxu0 0.0
        %281 = vmatprep.subr.mxu0 0.0
        %282 = vmatpush1.msra.mxu0 0.0
        %283 = vmatprep.subr.mxu0 0.0
        %284 = vmatpush1.msra.mxu0 0.0
        %285 = vmatprep.subr.mxu0 0.0
        %286 = vmatpush1.msra.mxu0 0.0
        %287 = vmatprep.subr.mxu0 0.0
        %288 = vmatpush1.msra.mxu0 0.0
        %289 = vmatprep.subr.mxu0 0.0
        %290 = vmatpush1.msra.mxu0 0.0
        %291 = vmatprep.subr.mxu0 0.0
        %292 = vmatpush1.msra.mxu0 0.0
        %293 = vmatprep.subr.mxu0 0.0
        %294 = vmatpush1.msra.mxu0 0.0
        %295 = vmatprep.subr.mxu0 0.0
        %296 = vmatpush1.msra.mxu0 0.0
        %297 = vmatprep.subr.mxu0 0.0
        %298 = vmatpush1.msra.mxu0 0.0
        %299 = vmatprep.subr.mxu0 0.0
        %300 = vmatpush1.msra.mxu0 0.0
        %301 = vmatprep.subr.mxu0 0.0
        %302 = vmatpush1.msra.mxu0 0.0
        %303 = vmatprep.subr.mxu0 0.0
        %304 = vmatpush1.msra.mxu0 0.0
        %305 = vmatprep.subr.mxu0 0.0
        %306 = vmatpush1.msra.mxu0 0.0
        %307 = vmatprep.subr.mxu0 0.0
        %308 = vmatpush1.msra.mxu0 0.0
        %309 = vmatprep.mubr.f32.mxu0 0.0
        %310 = vmatmul.mubr.f32.gmra.mrb[0].mxu0 %v236
        %v311 = vpop.f32.mrb[0].mxu0
        %v312 = vadd.f32 0.0, %v311
        %v313 = vpop.f32.mrb[0].mxu0
        %314 = vmatprep.mubr.f32.mxu0 0.0
        %315 = vmatmul.mubr.f32.gmra.mrb[0].mxu0 %v239
        %v316 = vpop.f32.mrb[0].mxu0
        %v317 = vadd.f32 0.0, %v316
        %v318 = vpop.f32.mrb[0].mxu0
        %319 = vdwg.mxu0
        %v320 = vmul.f32 %v231, %v231
        %v321 = vmul.f32 %v232, %v232
        %v322 = vsel %vm234, %v320, 0.0
        %323 = vadd.xlane.f32.xlu0 %v322
        %v324 = vpop.xlane.xlu0 %323
        %v325 = vsel %vm234, %v321, 0.0
        %326 = vadd.xlane.f32.xlu0 %v325
        %v327 = vpop.xlane.xlu0 %326
        %v328 = vmul.f32 %v233, %v233
        %v329 = vsel %vm241, %v328, 0.0
        %v330 = vrot.slane %v329, 4
        %v331 = vadd.f32 %v329, %v330
        %v332 = vrot.slane %v331, 2
        %v333 = vadd.f32 %v331, %v332
        %v334 = vrot.slane %v333, 1
        %v335 = vadd.f32 %v333, %v334
        %v336 = vmul.f32 %v312, -2.0
        %v337 = vmul.f32 %v317, -2.0
        %v338 = vadd.f32 %v336, %v324
        %v339 = vadd.f32 %v337, %v327
        %v340 = vadd.f32 %v338, %v335
        %v341 = vadd.f32 %v339, %v335
        %342 = vst [vmem:[%s228] sm:$0xff] %v340
        %343 = vst [vmem:[%s228 + $0x8] sm:$0xff] %v341
        %s344 = sand.u32 %s109, 1
        %s345 = scalar_lea.sflag [#allocation4], %s344
        %s346 = sand.u32 %s109, 1
        %s347 = smul.addr %s346, 16
        %s348 = scalar_lea.vmem [#allocation7], %s347
        // Predicated region
        $region37: #{tpu_custom_call.1} parent=27 // pred_check
          %p349 = pneg %p119
        $region38: #{tpu_custom_call.1} parent=27 // pred_check_branch
          %351 = sbr.rel (%p349) target = $region40
        $region39: #{tpu_custom_call.1} parent=27 // pred_region
          %s352 = smul.u32 2, %s28
          %s354 = ssub.s32 256, 256
          %355 = vsyncadd %s345, %s354
          %s356 = sadd.s32 %s29, %s352
          %s357 = smul.addr %s27, 2
          %s358 = sadd.s32 %s356, %s357
          %s359 = smul.addr %s358, 128
          %s360 = scalar_lea.hbm %s2, %s359
          %s361 = sshll.u32 %s348, 4
          %s362 = int_to_ptr.vmem [resolvable:$true] %s361
          %367 = dma.vmem_to_hbm [thread:$0]  %s362, 256, %s360, %s345, 128, 128, 8
        $region40: #{tpu_custom_call.1} parent=27 // pred_fallthru
          _
      $region28: #{tpu_custom_call.1} parent=5 // pred_fallthru
        _
      %p368 = scmp.le.s32.totalorder 2, %s17
      // Predicated region
      $region41: #{tpu_custom_call.1} parent=5 // pred_check
        %p369 = pneg %p368
      $region42: #{tpu_custom_call.1} parent=5 // pred_check_branch
        %371 = sbr.rel (%p369) target = $region44
      $region43: #{tpu_custom_call.1} parent=5 // pred_region
        %s372 = ssub.s32 %s17, 2
        // Predicated region
        $region45: #{tpu_custom_call.1} parent=43 // pred_check
          %p373 = pneg %p125
        $region46: #{tpu_custom_call.1} parent=43 // pred_check_branch
          %375 = sbr.rel (%p373) target = $region48
        $region47: #{tpu_custom_call.1} parent=43 // pred_region
          %s376 = sand.u32 %s110, 1
          %s377 = scalar_lea.sflag [#allocation4], %s376
          %s378 = sand.u32 %s110, 1
          %s379 = smul.addr %s378, 16
          %s380 = scalar_lea.vmem [#allocation7], %s379
          %381 = dma.done %s377, 256
        $region48: #{tpu_custom_call.1} parent=43 // pred_fallthru
          _
      $region44: #{tpu_custom_call.1} parent=5 // pred_fallthru
        _
    $region6: #{tpu_custom_call.1} parent=1 // loop_footer
      %s21 = sadd.s32 1, %s17
    $region7: #{tpu_custom_call.1} parent=1 // loop_footer_branch
      %16 = sbr.rel target = $region3
    $region8: #{tpu_custom_call.1} parent=1 // loop_exit
      _
    %382 = vsyncpa [#allocation3], 1
    %s383 = scalar_lea.sflag [#allocation3], 1
    %384 = vsyncpa %s383, 1
    %385 = vsyncpa [#allocation6], 1
    %s386 = scalar_lea.sflag [#allocation6], 1
    %387 = vsyncpa %s386, 1
    %388 = vsyncpa [#allocation4], 1
    %s389 = scalar_lea.sflag [#allocation4], 1
    %390 = vsyncpa %s389, 1

</llo_original>
